<compile_context>
chip_gen: v5e
topology: v5e:2x2
jax: 0.10.0
libtpu: 0.0.40
codegen_flags: <defaults>
</compile_context>

<pallas_src>
import functools

import jax
import jax.numpy as jnp
from jax.experimental import pallas as pl
from jax.experimental.pallas import tpu as pltpu

_LANE = 128      # vreg lane width
_SUBLANE = 8     # f32 sublane height


def _round_up(x, m):
    return ((x + m - 1) // m) * m


def _choose_tile_m(m, requested):
    """Pick the row-tile size.

    - As large as requested (big tiles amortize the ~0.35 us/step pipeline
      overhead and fill the MXU rows), but never larger than the array.
    - If a single requested-size tile would collapse the grid to one step,
      split into (at least) two tiles so both v7x TensorCores get work.
    Result is always legal for BlockSpec: either a multiple of 8 or == M.
    """
    if requested >= m:
        return m                        # one full block (block == array dim)
    tm = _round_up(requested, _SUBLANE)
    if pl.cdiv(m, tm) < 2:
        tm = _round_up(pl.cdiv(m, 2), _SUBLANE)
    return min(tm, m)


def _pad_lanes(a, axis):
    """Zero-pad `axis` of `a` up to a multiple of the 128-lane width."""
    size = a.shape[axis]
    pad = _round_up(size, _LANE) - size
    if pad == 0:
        return a
    widths = [(0, 0)] * a.ndim
    widths[axis] = (0, pad)
    return jnp.pad(a, widths)


def _mlp_kernel(x_ref, w1_ref, b1_ref, w2_ref, b2_ref, w3_ref, b3_ref, o_ref):
    # fc1 + relu  (bf16 x bf16 -> f32 accumulate on the MXU)
    h = jnp.dot(x_ref[...], w1_ref[...], preferred_element_type=jnp.float32)
    h = jnp.maximum(h + b1_ref[...], 0.0)
    # fc2 + relu  (hidden dims are lane-padded; pad columns stay exactly zero)
    h = jnp.dot(h.astype(w2_ref.dtype), w2_ref[...],
                preferred_element_type=jnp.float32)
    h = jnp.maximum(h + b2_ref[...], 0.0)
    # fc3 (no activation); output columns are zero-padded up to a lane multiple
    # so this store is an unmasked full-vreg vst.
    h = jnp.dot(h.astype(w3_ref.dtype), w3_ref[...],
                preferred_element_type=jnp.float32)
    o_ref[...] = (h + b3_ref[...]).astype(o_ref.dtype)


@functools.partial(jax.jit, static_argnames=("tile_m",))
def mlp_forward(x, w1, b1, w2, b2, w3, b3, *, tile_m=512):
    """x: (B, C, *spatial). Weights w_i: (in_i, out_i), biases b_i: (1, out_i)."""
    B, C = x.shape[0], x.shape[1]
    x2d = x.reshape(B * C, -1)                 # (M, input_dim) == x.view(B, C, -1)
    M, input_dim = x2d.shape
    out_dim = w3.shape[1]
    out_dtype = x.dtype

    # bf16 operands for native MXU issue + half the HBM bytes on the x stream.
    # (Upstream producers in a real model would already emit bf16, so this cast
    # fuses into the producer.)  Biases stay f32 and are added to the f32 acc.
    xb = x2d.astype(jnp.bfloat16)
    w1b = w1.astype(jnp.bfloat16)
    w2b = w2.astype(jnp.bfloat16)
    w3b = w3.astype(jnp.bfloat16)
    b1f = b1.astype(jnp.float32)
    b2f = b2.astype(jnp.float32)
    b3f = b3.astype(jnp.float32)

    # Lane-pad every feature axis that lives on lanes inside the kernel.  The
    # pad weights/biases are zeros, so padded hidden activations are
    # relu(0 + 0) == 0 and contribute nothing downstream; the math is exact.
    w1b = _pad_lanes(w1b, 1)                   # hidden1 columns
    b1f = _pad_lanes(b1f, 1)
    w2b = _pad_lanes(_pad_lanes(w2b, 0), 1)    # hidden1 rows, hidden2 columns
    b2f = _pad_lanes(b2f, 1)
    w3b = _pad_lanes(_pad_lanes(w3b, 0), 1)    # hidden2 rows, output columns
    b3f = _pad_lanes(b3f, 1)

    h1p = w1b.shape[1]
    h2p = w2b.shape[1]
    out_pad = w3b.shape[1]

    tm = _choose_tile_m(M, tile_m)
    grid = (pl.cdiv(M, tm),)

    out2d = pl.pallas_call(
        _mlp_kernel,
        out_shape=jax.ShapeDtypeStruct((M, out_pad), out_dtype),
        grid_spec=pltpu.PrefetchScalarGridSpec(
            num_scalar_prefetch=0,
            grid=grid,
            in_specs=[
                pl.BlockSpec((tm, input_dim), lambda i: (i, 0)),   # x rows
                pl.BlockSpec((input_dim, h1p), lambda i: (0, 0)),  # w1 (grid-invariant)
                pl.BlockSpec((1, h1p), lambda i: (0, 0)),          # b1
                pl.BlockSpec((h1p, h2p), lambda i: (0, 0)),        # w2
                pl.BlockSpec((1, h2p), lambda i: (0, 0)),          # b2
                pl.BlockSpec((h2p, out_pad), lambda i: (0, 0)),    # w3 (lane-padded)
                pl.BlockSpec((1, out_pad), lambda i: (0, 0)),      # b3 (lane-padded)
            ],
            out_specs=pl.BlockSpec((tm, out_pad), lambda i: (i, 0)),
        ),
        compiler_params=pltpu.CompilerParams(
            dimension_semantics=("parallel",)),
    )(xb, w1b, b1f, w2b, b2f, w3b, b3f)

    return out2d[:, :out_dim].reshape(B, C, out_dim)


def _init_linear(key, fan_in, fan_out, dtype=jnp.float32):
    """Deterministic init mirroring nn.Linear's U(-1/sqrt(fan_in), 1/sqrt(fan_in)).
    Returns weight pre-transposed to (in, out) and bias shaped (1, out)."""
    kw, kb = jax.random.split(key)
    bound = 1.0 / (fan_in ** 0.5)
    w = jax.random.uniform(kw, (fan_in, fan_out), dtype, minval=-bound, maxval=bound)
    b = jax.random.uniform(kb, (1, fan_out), dtype, minval=-bound, maxval=bound)
    return w, b


def _reference(x, w1, b1, w2, b2, w3, b3):
    """Pure-JAX f32 reference of the PyTorch forward."""
    B, C = x.shape[0], x.shape[1]
    h = x.reshape(B, C, -1)
    h = jnp.maximum(h @ w1 + b1[0], 0.0)
    h = jnp.maximum(h @ w2 + b2[0], 0.0)
    return h @ w3 + b3[0]


if __name__ == "__main__":
    key = jax.random.PRNGKey(0)
    kx, k1, k2, k3 = jax.random.split(key, 4)

    # Module hyper-params (small, consistent with forward's view(B, C, -1)):
    B, C, H, W = 2, 4, 16, 16
    input_dim = H * W          # 256
    hidden_dim1 = 128
    hidden_dim2 = 64
    output_dim = 32

    x = jax.random.normal(kx, (B, C, H, W), jnp.float32)
    w1, b1 = _init_linear(k1, input_dim, hidden_dim1)
    w2, b2 = _init_linear(k2, hidden_dim1, hidden_dim2)
    w3, b3 = _init_linear(k3, hidden_dim2, output_dim)

    out = mlp_forward(x, w1, b1, w2, b2, w3, b3)
    out = jax.block_until_ready(out)

    ref = _reference(x, w1, b1, w2, b2, w3, b3)
    assert out.shape == (B, C, output_dim), out.shape
    # bf16 matmul operands with f32 accumulation -> looser tolerance vs f32 ref.
    assert jnp.allclose(out, ref, atol=5e-2, rtol=5e-2), "mismatch vs reference"

    print("KERNEL_OK")
</pallas_src>

<mosaic_0001>
module attributes {stable_mosaic.version = 11 : i64} {
  func.func @_mlp_kernel(%arg0: i32, %arg1: memref<8x256xbf16, #tpu.memory_space<vmem>>, %arg2: memref<256x128xbf16, #tpu.memory_space<vmem>>, %arg3: memref<1x128xf32, #tpu.memory_space<vmem>>, %arg4: memref<128x128xbf16, #tpu.memory_space<vmem>>, %arg5: memref<1x128xf32, #tpu.memory_space<vmem>>, %arg6: memref<128x128xbf16, #tpu.memory_space<vmem>>, %arg7: memref<1x128xf32, #tpu.memory_space<vmem>>, %arg8: memref<8x128xf32, #tpu.memory_space<vmem>>) attributes {dimension_semantics = [#tpu.dimension_semantics<parallel>], iteration_bounds = array<i64: 1>, scalar_prefetch = 0 : i64, scratch_operands = 0 : i64, tpu.core_type = #tpu.core_type<tc>, window_params = [{transform_indices = @transform_0, window_bounds = array<i64: 8, 256>}, {pipeline_mode = #tpu.pipeline_mode<synchronous>, transform_indices = @transform_1, window_bounds = array<i64: 256, 128>}, {pipeline_mode = #tpu.pipeline_mode<synchronous>, transform_indices = @transform_2, window_bounds = array<i64: 1, 128>}, {pipeline_mode = #tpu.pipeline_mode<synchronous>, transform_indices = @transform_3, window_bounds = array<i64: 128, 128>}, {pipeline_mode = #tpu.pipeline_mode<synchronous>, transform_indices = @transform_4, window_bounds = array<i64: 1, 128>}, {pipeline_mode = #tpu.pipeline_mode<synchronous>, transform_indices = @transform_5, window_bounds = array<i64: 128, 128>}, {pipeline_mode = #tpu.pipeline_mode<synchronous>, transform_indices = @transform_6, window_bounds = array<i64: 1, 128>}, {transform_indices = @transform_7, window_bounds = array<i64: 8, 128>}]} {
    %c0 = arith.constant 0 : index
    %c0_0 = arith.constant 0 : index
    %0 = vector.load %arg1[%c0, %c0_0] : memref<8x256xbf16, #tpu.memory_space<vmem>>, vector<8x256xbf16>
    %c0_1 = arith.constant 0 : index
    %c0_2 = arith.constant 0 : index
    %1 = vector.load %arg2[%c0_1, %c0_2] : memref<256x128xbf16, #tpu.memory_space<vmem>>, vector<256x128xbf16>
    %cst = arith.constant dense<0.000000e+00> : vector<8x128xf32>
    %2 = tpu.matmul %0, %1, %cst {dimension_numbers = #tpu.dot_dimension_numbers<[1], [0], [0], [1], [0, 0, 1, 1], [], []>} : vector<8x256xbf16>, vector<256x128xbf16>, vector<8x128xf32> -> vector<8x128xf32>
    %c0_3 = arith.constant 0 : index
    %c0_4 = arith.constant 0 : index
    %3 = vector.load %arg3[%c0_3, %c0_4] : memref<1x128xf32, #tpu.memory_space<vmem>>, vector<1x128xf32>
    %4 = vector.broadcast %3 : vector<1x128xf32> to vector<8x128xf32>
    %5 = arith.addf %2, %4 : vector<8x128xf32>
    %cst_5 = arith.constant 0.000000e+00 : f32
    %6 = vector.broadcast %cst_5 : f32 to vector<8x128xf32>
    %7 = arith.maximumf %5, %6 : vector<8x128xf32>
    %8 = arith.truncf %7 : vector<8x128xf32> to vector<8x128xbf16>
    %c0_6 = arith.constant 0 : index
    %c0_7 = arith.constant 0 : index
    %9 = vector.load %arg4[%c0_6, %c0_7] : memref<128x128xbf16, #tpu.memory_space<vmem>>, vector<128x128xbf16>
    %cst_8 = arith.constant dense<0.000000e+00> : vector<8x128xf32>
    %10 = tpu.matmul %8, %9, %cst_8 {dimension_numbers = #tpu.dot_dimension_numbers<[1], [0], [0], [1], [0, 0, 1, 1], [], []>} : vector<8x128xbf16>, vector<128x128xbf16>, vector<8x128xf32> -> vector<8x128xf32>
    %c0_9 = arith.constant 0 : index
    %c0_10 = arith.constant 0 : index
    %11 = vector.load %arg5[%c0_9, %c0_10] : memref<1x128xf32, #tpu.memory_space<vmem>>, vector<1x128xf32>
    %12 = vector.broadcast %11 : vector<1x128xf32> to vector<8x128xf32>
    %13 = arith.addf %10, %12 : vector<8x128xf32>
    %cst_11 = arith.constant 0.000000e+00 : f32
    %14 = vector.broadcast %cst_11 : f32 to vector<8x128xf32>
    %15 = arith.maximumf %13, %14 : vector<8x128xf32>
    %16 = arith.truncf %15 : vector<8x128xf32> to vector<8x128xbf16>
    %c0_12 = arith.constant 0 : index
    %c0_13 = arith.constant 0 : index
    %17 = vector.load %arg6[%c0_12, %c0_13] : memref<128x128xbf16, #tpu.memory_space<vmem>>, vector<128x128xbf16>
    %cst_14 = arith.constant dense<0.000000e+00> : vector<8x128xf32>
    %18 = tpu.matmul %16, %17, %cst_14 {dimension_numbers = #tpu.dot_dimension_numbers<[1], [0], [0], [1], [0, 0, 1, 1], [], []>} : vector<8x128xbf16>, vector<128x128xbf16>, vector<8x128xf32> -> vector<8x128xf32>
    %c0_15 = arith.constant 0 : index
    %c0_16 = arith.constant 0 : index
    %19 = vector.load %arg7[%c0_15, %c0_16] : memref<1x128xf32, #tpu.memory_space<vmem>>, vector<1x128xf32>
    %20 = vector.broadcast %19 : vector<1x128xf32> to vector<8x128xf32>
    %21 = arith.addf %18, %20 : vector<8x128xf32>
    %c0_17 = arith.constant 0 : index
    %c0_18 = arith.constant 0 : index
    %22 = vector.load %arg8[%c0_17, %c0_18] : memref<8x128xf32, #tpu.memory_space<vmem>>, vector<8x128xf32>
    tpu.vector_store %arg8[%c0_17, %c0_18], %21 {strides = array<i32>} : memref<8x128xf32, #tpu.memory_space<vmem>>, vector<8x128xf32>,
    return
  }
  func.func @transform_0(%arg0: i32) -> (i32, i32) {
    %c0_i32 = arith.constant 0 : i32
    %c0_i32_0 = arith.constant 0 : i32
    return %arg0, %c0_i32 : i32, i32
  }
  func.func @transform_1(%arg0: i32) -> (i32, i32) {
    %c0_i32 = arith.constant 0 : i32
    %c0_i32_0 = arith.constant 0 : i32
    %c0_i32_1 = arith.constant 0 : i32
    return %c0_i32, %c0_i32_0 : i32, i32
  }
  func.func @transform_2(%arg0: i32) -> (i32, i32) {
    %c0_i32 = arith.constant 0 : i32
    %c0_i32_0 = arith.constant 0 : i32
    %c0_i32_1 = arith.constant 0 : i32
    return %c0_i32, %c0_i32_0 : i32, i32
  }
  func.func @transform_3(%arg0: i32) -> (i32, i32) {
    %c0_i32 = arith.constant 0 : i32
    %c0_i32_0 = arith.constant 0 : i32
    %c0_i32_1 = arith.constant 0 : i32
    return %c0_i32, %c0_i32_0 : i32, i32
  }
  func.func @transform_4(%arg0: i32) -> (i32, i32) {
    %c0_i32 = arith.constant 0 : i32
    %c0_i32_0 = arith.constant 0 : i32
    %c0_i32_1 = arith.constant 0 : i32
    return %c0_i32, %c0_i32_0 : i32, i32
  }
  func.func @transform_5(%arg0: i32) -> (i32, i32) {
    %c0_i32 = arith.constant 0 : i32
    %c0_i32_0 = arith.constant 0 : i32
    %c0_i32_1 = arith.constant 0 : i32
    return %c0_i32, %c0_i32_0 : i32, i32
  }
  func.func @transform_6(%arg0: i32) -> (i32, i32) {
    %c0_i32 = arith.constant 0 : i32
    %c0_i32_0 = arith.constant 0 : i32
    %c0_i32_1 = arith.constant 0 : i32
    return %c0_i32, %c0_i32_0 : i32, i32
  }
  func.func @transform_7(%arg0: i32) -> (i32, i32) {
    %c0_i32 = arith.constant 0 : i32
    %c0_i32_0 = arith.constant 0 : i32
    return %arg0, %c0_i32 : i32, i32
  }
}

</mosaic_0001>

<llo_original>
// kernel: mlp_forward.1
$region0: #{mlp_forward.1}
  #allocation0 [shape = 'u32[]', space=smem, size = 0x4, offset = 0x4, fixed_abs, tag = 'smem constant byte address 0x4 - core index']
  #allocation1 [shape = 'u32[72,128]{1,0:T(1,128)}', space=vmem, size = 0x9000, scoped, tag = 'internal scratch']
  %s0 = inlined_call_operand.vmem [shape: bf16[8,256], index: 0, kind: input, shape index: {}]
  %s1 = inlined_call_operand.vmem [shape: bf16[256,128], index: 1, kind: input, shape index: {}]
  %s2 = inlined_call_operand.vmem [shape: f32[1,128], index: 2, kind: input, shape index: {}]
  %s3 = inlined_call_operand.vmem [shape: bf16[128,128], index: 3, kind: input, shape index: {}]
  %s4 = inlined_call_operand.vmem [shape: f32[1,128], index: 4, kind: input, shape index: {}]
  %s5 = inlined_call_operand.vmem [shape: bf16[128,128], index: 5, kind: input, shape index: {}]
  %s6 = inlined_call_operand.vmem [shape: f32[1,128], index: 6, kind: input, shape index: {}]
  %s7 = inlined_call_operand.hbm [shape: f32[8,128], index: 7, kind: output, shape index: {}]
  %s8 = sld [smem:[#allocation0]]
  $region38: #{mlp_forward.1} parent=0
    _
  %s10 = ssub.s32 1, %s8
  %s11 = scalar_select 0, %s10, %s8
  $region1: #{mlp_forward.1} parent=0
    #allocation2 [shape = 'u8[4096]{0}', space=vmem, size = 0x1000, scoped, tag = 'output window, operand 0, single buffered']
    #allocation3 [shape = 's32[1]{0}', space=sflag, size = 0x4, scoped, tag = 'scoped memory for mlp_forward.1']
    %12 = vsyncpa [#allocation3], 0
    // Predicated region
    $region2: #{mlp_forward.1} parent=1 // pred_check
      _
    $region3: #{mlp_forward.1} parent=1 // pred_check_branch
      %14 = sbr.rel (0) target = $region5
    $region4: #{mlp_forward.1} parent=1 // pred_region
      _
    $region5: #{mlp_forward.1} parent=1 // pred_fallthru
      _
    // Predicated region
    $region6: #{mlp_forward.1} parent=1 // pred_check
      _
    $region7: #{mlp_forward.1} parent=1 // pred_check_branch
      %16 = sbr.rel (0) target = $region9
    $region8: #{mlp_forward.1} parent=1 // pred_region
      _
    $region9: #{mlp_forward.1} parent=1 // pred_fallthru
      _
    // Predicated region
    $region10: #{mlp_forward.1} parent=1 // pred_check
      _
    $region11: #{mlp_forward.1} parent=1 // pred_check_branch
      %18 = sbr.rel (0) target = $region13
    $region12: #{mlp_forward.1} parent=1 // pred_region
      _
    $region13: #{mlp_forward.1} parent=1 // pred_fallthru
      _
    // Predicated region
    $region14: #{mlp_forward.1} parent=1 // pred_check
      _
    $region15: #{mlp_forward.1} parent=1 // pred_check_branch
      %20 = sbr.rel (0) target = $region17
    $region16: #{mlp_forward.1} parent=1 // pred_region
      _
    $region17: #{mlp_forward.1} parent=1 // pred_fallthru
      _
    // Predicated region
    $region18: #{mlp_forward.1} parent=1 // pred_check
      _
    $region19: #{mlp_forward.1} parent=1 // pred_check_branch
      %22 = sbr.rel (0) target = $region21
    $region20: #{mlp_forward.1} parent=1 // pred_region
      _
    $region21: #{mlp_forward.1} parent=1 // pred_fallthru
      _
    // Predicated region
    $region22: #{mlp_forward.1} parent=1 // pred_check
      _
    $region23: #{mlp_forward.1} parent=1 // pred_check_branch
      %24 = sbr.rel (0) target = $region25
    $region24: #{mlp_forward.1} parent=1 // pred_region
      _
    $region25: #{mlp_forward.1} parent=1 // pred_fallthru
      _
    // Predicated region
    $region26: #{mlp_forward.1} parent=1 // pred_check
      _
    $region27: #{mlp_forward.1} parent=1 // pred_check_branch
      %26 = sbr.rel (0) target = $region29
    $region28: #{mlp_forward.1} parent=1 // pred_region
      _
    $region29: #{mlp_forward.1} parent=1 // pred_fallthru
      _
    %v27 = vld [vmem:[%s0] sm:$0xff]
    %v28 = vld [vmem:[%s1] sm:$0xf]
    %v29 = vld [vmem:[%s1 + $0x4] sm:$0xf]
    %v30 = vld [vmem:[%s1 + $0x8] sm:$0xf]
    %v31 = vld [vmem:[%s1 + $0xc] sm:$0xf]
    %v32 = vld [vmem:[%s1 + $0x10] sm:$0xf]
    %v33 = vld [vmem:[%s1 + $0x14] sm:$0xf]
    %v34 = vld [vmem:[%s1 + $0x18] sm:$0xf]
    %v35 = vld [vmem:[%s1 + $0x1c] sm:$0xf]
    %v36 = vld [vmem:[%s1 + $0x20] sm:$0xf]
    %v37 = vld [vmem:[%s1 + $0x24] sm:$0xf]
    %v38 = vld [vmem:[%s1 + $0x28] sm:$0xf]
    %v39 = vld [vmem:[%s1 + $0x2c] sm:$0xf]
    %v40 = vld [vmem:[%s1 + $0x30] sm:$0xf]
    %v41 = vld [vmem:[%s1 + $0x34] sm:$0xf]
    %v42 = vld [vmem:[%s1 + $0x38] sm:$0xf]
    %v43 = vld [vmem:[%s1 + $0x3c] sm:$0xf]
    %v44 = vld [vmem:[%s1 + $0x40] sm:$0xf]
    %v45 = vld [vmem:[%s1 + $0x44] sm:$0xf]
    %v46 = vld [vmem:[%s1 + $0x48] sm:$0xf]
    %v47 = vld [vmem:[%s1 + $0x4c] sm:$0xf]
    %v48 = vld [vmem:[%s1 + $0x50] sm:$0xf]
    %v49 = vld [vmem:[%s1 + $0x54] sm:$0xf]
    %v50 = vld [vmem:[%s1 + $0x58] sm:$0xf]
    %v51 = vld [vmem:[%s1 + $0x5c] sm:$0xf]
    %v52 = vld [vmem:[%s1 + $0x60] sm:$0xf]
    %v53 = vld [vmem:[%s1 + $0x64] sm:$0xf]
    %v54 = vld [vmem:[%s1 + $0x68] sm:$0xf]
    %v55 = vld [vmem:[%s1 + $0x6c] sm:$0xf]
    %v56 = vld [vmem:[%s1 + $0x70] sm:$0xf]
    %v57 = vld [vmem:[%s1 + $0x74] sm:$0xf]
    %v58 = vld [vmem:[%s1 + $0x78] sm:$0xf]
    %v59 = vld [vmem:[%s1 + $0x7c] sm:$0xf]
    %v60 = vld [vmem:[%s2] sm:$0x1]
    %v62 = vperm.slane %v60, 0
    %v65 = vunpack.c.l.b16 %v27
    %v66 = vunpack.c.h.b16 %v27
    %v67 = vpack.c.b16 %v65, %v65
    %v68 = vpack.c.b16 %v66, %v66
    %v103 = vunpack.c.l.b16 %v28
    %v104 = vunpack.c.l.b16 %v29
    %v105 = vunpack.c.l.b16 %v30
    %v106 = vunpack.c.l.b16 %v31
    %v107 = vunpack.c.l.b16 %v32
    %v108 = vunpack.c.l.b16 %v33
    %v109 = vunpack.c.l.b16 %v34
    %v110 = vunpack.c.l.b16 %v35
    %v111 = vunpack.c.l.b16 %v36
    %v112 = vunpack.c.l.b16 %v37
    %v113 = vunpack.c.l.b16 %v38
    %v114 = vunpack.c.l.b16 %v39
    %v115 = vunpack.c.l.b16 %v40
    %v116 = vunpack.c.l.b16 %v41
    %v117 = vunpack.c.l.b16 %v42
    %v118 = vunpack.c.l.b16 %v43
    %v119 = vunpack.c.l.b16 %v44
    %v120 = vunpack.c.l.b16 %v45
    %v121 = vunpack.c.l.b16 %v46
    %v122 = vunpack.c.l.b16 %v47
    %v123 = vunpack.c.l.b16 %v48
    %v124 = vunpack.c.l.b16 %v49
    %v125 = vunpack.c.l.b16 %v50
    %v126 = vunpack.c.l.b16 %v51
    %v127 = vunpack.c.l.b16 %v52
    %v128 = vunpack.c.l.b16 %v53
    %v129 = vunpack.c.l.b16 %v54
    %v130 = vunpack.c.l.b16 %v55
    %v131 = vunpack.c.l.b16 %v56
    %v132 = vunpack.c.l.b16 %v57
    %v133 = vunpack.c.l.b16 %v58
    %v134 = vunpack.c.l.b16 %v59
    %v135 = vpack.c.b16 %v104, %v103
    %v136 = vpack.c.b16 %v106, %v105
    %v137 = vpack.c.b16 %v108, %v107
    %v138 = vpack.c.b16 %v110, %v109
    %v139 = vpack.c.b16 %v112, %v111
    %v140 = vpack.c.b16 %v114, %v113
    %v141 = vpack.c.b16 %v116, %v115
    %v142 = vpack.c.b16 %v118, %v117
    %v143 = vpack.c.b16 %v120, %v119
    %v144 = vpack.c.b16 %v122, %v121
    %v145 = vpack.c.b16 %v124, %v123
    %v146 = vpack.c.b16 %v126, %v125
    %v147 = vpack.c.b16 %v128, %v127
    %v148 = vpack.c.b16 %v130, %v129
    %v149 = vpack.c.b16 %v132, %v131
    %v150 = vpack.c.b16 %v134, %v133
    %167 = vmatpush.bf16.msra.mxu0 %v142
    %168 = vmatpush.bf16.msra.mxu0 %v141
    %169 = vmatpush.bf16.msra.mxu0 %v140
    %170 = vmatpush.bf16.msra.mxu0 %v139
    %171 = vmatpush.bf16.msra.mxu0 %v138
    %172 = vmatpush.bf16.msra.mxu0 %v137
    %173 = vmatpush.bf16.msra.mxu0 %v136
    %174 = vmatpush.bf16.msra.mxu0 %v135
    %175 = vmatmul.bf16.gmra.mxu0 %v67
    %v176 = vpop.f32.mrf.mxu0
    %v177 = vadd.f32 %v62, %v176
    %v178 = vpop.f32.mrf.mxu0
    %179 = vdwg.mxu0
    %180 = vmatpush.bf16.msra.mxu0 %v150
    %181 = vmatpush.bf16.msra.mxu0 %v149
    %182 = vmatpush.bf16.msra.mxu0 %v148
    %183 = vmatpush.bf16.msra.mxu0 %v147
    %184 = vmatpush.bf16.msra.mxu0 %v146
    %185 = vmatpush.bf16.msra.mxu0 %v145
    %186 = vmatpush.bf16.msra.mxu0 %v144
    %187 = vmatpush.bf16.msra.mxu0 %v143
    %188 = vmatmul.bf16.gmra.mxu0 %v68
    %v189 = vpop.f32.mrf.mxu0
    %v190 = vadd.f32 %v177, %v189
    %v191 = vpop.f32.mrf.mxu0
    %192 = vdwg.mxu0
    %v193 = vmax.f32 %v190, 0.0
    %v194 = vpack.c.bf16 %v193, %v193
    %v195 = vld [vmem:[%s3] sm:$0xf]
    %v196 = vld [vmem:[%s3 + $0x4] sm:$0xf]
    %v197 = vld [vmem:[%s3 + $0x8] sm:$0xf]
    %v198 = vld [vmem:[%s3 + $0xc] sm:$0xf]
    %v199 = vld [vmem:[%s3 + $0x10] sm:$0xf]
    %v200 = vld [vmem:[%s3 + $0x14] sm:$0xf]
    %v201 = vld [vmem:[%s3 + $0x18] sm:$0xf]
    %v202 = vld [vmem:[%s3 + $0x1c] sm:$0xf]
    %v203 = vld [vmem:[%s3 + $0x20] sm:$0xf]
    %v204 = vld [vmem:[%s3 + $0x24] sm:$0xf]
    %v205 = vld [vmem:[%s3 + $0x28] sm:$0xf]
    %v206 = vld [vmem:[%s3 + $0x2c] sm:$0xf]
    %v207 = vld [vmem:[%s3 + $0x30] sm:$0xf]
    %v208 = vld [vmem:[%s3 + $0x34] sm:$0xf]
    %v209 = vld [vmem:[%s3 + $0x38] sm:$0xf]
    %v210 = vld [vmem:[%s3 + $0x3c] sm:$0xf]
    %v211 = vld [vmem:[%s4] sm:$0x1]
    %v213 = vperm.slane %v211, 0
    %v231 = vunpack.c.l.b16 %v195
    %v232 = vunpack.c.l.b16 %v196
    %v233 = vunpack.c.l.b16 %v197
    %v234 = vunpack.c.l.b16 %v198
    %v235 = vunpack.c.l.b16 %v199
    %v236 = vunpack.c.l.b16 %v200
    %v237 = vunpack.c.l.b16 %v201
    %v238 = vunpack.c.l.b16 %v202
    %v239 = vunpack.c.l.b16 %v203
    %v240 = vunpack.c.l.b16 %v204
    %v241 = vunpack.c.l.b16 %v205
    %v242 = vunpack.c.l.b16 %v206
    %v243 = vunpack.c.l.b16 %v207
    %v244 = vunpack.c.l.b16 %v208
    %v245 = vunpack.c.l.b16 %v209
    %v246 = vunpack.c.l.b16 %v210
    %v247 = vpack.c.b16 %v232, %v231
    %v248 = vpack.c.b16 %v234, %v233
    %v249 = vpack.c.b16 %v236, %v235
    %v250 = vpack.c.b16 %v238, %v237
    %v251 = vpack.c.b16 %v240, %v239
    %v252 = vpack.c.b16 %v242, %v241
    %v253 = vpack.c.b16 %v244, %v243
    %v254 = vpack.c.b16 %v246, %v245
    %263 = vmatpush.bf16.msra.mxu0 %v254
    %264 = vmatpush.bf16.msra.mxu0 %v253
    %265 = vmatpush.bf16.msra.mxu0 %v252
    %266 = vmatpush.bf16.msra.mxu0 %v251
    %267 = vmatpush.bf16.msra.mxu0 %v250
    %268 = vmatpush.bf16.msra.mxu0 %v249
    %269 = vmatpush.bf16.msra.mxu0 %v248
    %270 = vmatpush.bf16.msra.mxu0 %v247
    %271 = vmatmul.bf16.gmra.mxu0 %v194
    %v272 = vpop.f32.mrf.mxu0
    %v273 = vadd.f32 %v213, %v272
    %v274 = vpop.f32.mrf.mxu0
    %275 = vdwg.mxu0
    %v276 = vmax.f32 %v273, 0.0
    %v277 = vpack.c.bf16 %v276, %v276
    %v278 = vld [vmem:[%s5] sm:$0xf]
    %v279 = vld [vmem:[%s5 + $0x4] sm:$0xf]
    %v280 = vld [vmem:[%s5 + $0x8] sm:$0xf]
    %v281 = vld [vmem:[%s5 + $0xc] sm:$0xf]
    %v282 = vld [vmem:[%s5 + $0x10] sm:$0xf]
    %v283 = vld [vmem:[%s5 + $0x14] sm:$0xf]
    %v284 = vld [vmem:[%s5 + $0x18] sm:$0xf]
    %v285 = vld [vmem:[%s5 + $0x1c] sm:$0xf]
    %v286 = vld [vmem:[%s5 + $0x20] sm:$0xf]
    %v287 = vld [vmem:[%s5 + $0x24] sm:$0xf]
    %v288 = vld [vmem:[%s5 + $0x28] sm:$0xf]
    %v289 = vld [vmem:[%s5 + $0x2c] sm:$0xf]
    %v290 = vld [vmem:[%s5 + $0x30] sm:$0xf]
    %v291 = vld [vmem:[%s5 + $0x34] sm:$0xf]
    %v292 = vld [vmem:[%s5 + $0x38] sm:$0xf]
    %v293 = vld [vmem:[%s5 + $0x3c] sm:$0xf]
    %v294 = vld [vmem:[%s6] sm:$0x1]
    %v296 = vperm.slane %v294, 0
    %v314 = vunpack.c.l.b16 %v278
    %v315 = vunpack.c.l.b16 %v279
    %v316 = vunpack.c.l.b16 %v280
    %v317 = vunpack.c.l.b16 %v281
    %v318 = vunpack.c.l.b16 %v282
    %v319 = vunpack.c.l.b16 %v283
    %v320 = vunpack.c.l.b16 %v284
    %v321 = vunpack.c.l.b16 %v285
    %v322 = vunpack.c.l.b16 %v286
    %v323 = vunpack.c.l.b16 %v287
    %v324 = vunpack.c.l.b16 %v288
    %v325 = vunpack.c.l.b16 %v289
    %v326 = vunpack.c.l.b16 %v290
    %v327 = vunpack.c.l.b16 %v291
    %v328 = vunpack.c.l.b16 %v292
    %v329 = vunpack.c.l.b16 %v293
    %v330 = vpack.c.b16 %v315, %v314
    %v331 = vpack.c.b16 %v317, %v316
    %v332 = vpack.c.b16 %v319, %v318
    %v333 = vpack.c.b16 %v321, %v320
    %v334 = vpack.c.b16 %v323, %v322
    %v335 = vpack.c.b16 %v325, %v324
    %v336 = vpack.c.b16 %v327, %v326
    %v337 = vpack.c.b16 %v329, %v328
    %346 = vmatpush.bf16.msra.mxu0 %v337
    %347 = vmatpush.bf16.msra.mxu0 %v336
    %348 = vmatpush.bf16.msra.mxu0 %v335
    %349 = vmatpush.bf16.msra.mxu0 %v334
    %350 = vmatpush.bf16.msra.mxu0 %v333
    %351 = vmatpush.bf16.msra.mxu0 %v332
    %352 = vmatpush.bf16.msra.mxu0 %v331
    %353 = vmatpush.bf16.msra.mxu0 %v330
    %354 = vmatmul.bf16.gmra.mxu0 %v277
    %v355 = vpop.f32.mrf.mxu0
    %v356 = vadd.f32 %v296, %v355
    %v357 = vpop.f32.mrf.mxu0
    %358 = vdwg.mxu0
    %359 = vst [vmem:[#allocation2] sm:$0xff] %v356
    // Predicated region
    $region30: #{mlp_forward.1} parent=1 // pred_check
      _
    $region31: #{mlp_forward.1} parent=1 // pred_check_branch
      %361 = sbr.rel (0) target = $region33
    $region32: #{mlp_forward.1} parent=1 // pred_region
      %363 = vsyncadd [#allocation3], 0
      %s365 = sshll.u32 [#allocation2], 4
      %s366 = int_to_ptr.vmem [resolvable:$true] %s365
      %s367 = sshll.u32 %s7, 4
      %s368 = int_to_ptr.hbm [resolvable:$true] %s367
      %370 = dma.vmem_to_hbm [thread:$0]  %s366, 128, %s368, [#allocation3]
    $region33: #{mlp_forward.1} parent=1 // pred_fallthru
      _
    // Predicated region
    $region34: #{mlp_forward.1} parent=1 // pred_check
      _
    $region35: #{mlp_forward.1} parent=1 // pred_check_branch
      %372 = sbr.rel (0) target = $region37
    $region36: #{mlp_forward.1} parent=1 // pred_region
      %374 = dma.done [#allocation3], 128
    $region37: #{mlp_forward.1} parent=1 // pred_fallthru
      _
    %375 = vsyncpa [#allocation3], 1

</llo_original>
